<compile_context>
chip_gen: v5e
topology: v5e:2x2
jax: 0.10.0
libtpu: 0.0.40
codegen_flags: <defaults>
</compile_context>

<pallas_src>
import jax
import jax.numpy as jnp
from jax.experimental import pallas as pl
from jax.experimental.pallas import tpu as pltpu


C_PAD = 128    # channel lanes padded to one full vreg lane width
H_PAD = 128    # hidden lanes padded likewise
OUT_PAD = 128  # final output lanes (lane-dense store; wrapper slices to num_classes)
TAP = 16       # lane-group width for the fused 3-tap conv packing (>= every Cin/Cout)

_VMEM = pl.BlockSpec(memory_space=pltpu.MemorySpace.VMEM)


def _silu(v):
    # exp and the approximate reciprocal both run on the EUP (otherwise idle slot);
    # everything else stays f32 so the kernel is also v5e-safe (no bf16 VPU there).
    return v * pl.reciprocal(1.0 + jnp.exp(-v), approx=True)


def _silu_ref(v):
    return v * (1.0 / (1.0 + jnp.exp(-v)))


def _make_unet_kernel(B, L0, depth, Lb):
    rows = B * L0
    n_lvl = 4 * depth  # per conv level: stacked tap weight, bias, prev-mask, next-mask

    def kernel(*refs):
        x_ref = refs[0]
        lvl = refs[1:1 + n_lvl]
        gsel_ref, w1_ref, b1_ref, w2_ref, b2_ref = refs[1 + n_lvl:1 + n_lvl + 5]
        o_ref = refs[-1]

        x = x_ref[...]              # (rows, C_PAD) f32; row = (b, l), lanes = channels
        stride = 1                  # spacing of valid rows at the current level
        for i in range(depth):
            w_st = lvl[4 * i + 0]   # (C_PAD, C_PAD) bf16 — 3 taps stacked along K
            bias = lvl[4 * i + 1]   # (1, C_PAD) f32
            m_p = lvl[4 * i + 2]    # (rows, 1) f32 0/1 — zero at sequence starts
            m_n = lvl[4 * i + 3]    # (rows, 1) f32 0/1 — zero at sequence ends

            # Neighbours via cyclic sublane roll (XLU); edge masks applied BEFORE the
            # lane packing so wrapped rows never leak across batch / padding edges.
            x_prev = pltpu.roll(x, shift=stride, axis=0) * m_p[...]
            x_next = pltpu.roll(x, shift=rows - stride, axis=0) * m_n[...]
            # Lane-pack the three taps into disjoint TAP-wide groups -> one MXU dot.
            packed = (x_prev
                      + pltpu.roll(x, shift=TAP, axis=1)
                      + pltpu.roll(x_next, shift=2 * TAP, axis=1))
            y = jnp.dot(packed.astype(jnp.bfloat16), w_st[...],
                        preferred_element_type=jnp.float32)
            y = jnp.maximum(y + bias[...], 0.0)

            if i < depth - 1:
                # maxpool(2): pair-max via roll.  Rows are NOT compacted — the next
                # level just doubles its stride — so no selection matmul and the conv
                # LHS stays `rows` tall.
                y = jnp.maximum(y, pltpu.roll(y, shift=rows - stride, axis=0))
                stride *= 2
            x = y

        # ---- head: gather bottleneck rows -> silu -> linear1 -> silu -> linear2 ----
        # gsel (precomputed 0/1): output row l*B + b  <-  strided row b*L0 + l*stride.
        a = _silu(jnp.dot(gsel_ref[...], x, preferred_element_type=jnp.float32))
        # linear1 against the (l, c)-packed w1 slab: Lb static-slice dots.
        h = jnp.zeros((B, H_PAD), jnp.float32)
        for l in range(Lb):
            h = h + jnp.dot(a[l * B:(l + 1) * B, :].astype(jnp.bfloat16),
                            w1_ref[l * C_PAD:(l + 1) * C_PAD, :],
                            preferred_element_type=jnp.float32)
        h1 = _silu(h + b1_ref[...])
        out = jnp.dot(h1.astype(jnp.bfloat16), w2_ref[...],
                      preferred_element_type=jnp.float32) + b2_ref[...]
        o_ref[...] = _silu(out)     # lane-dense (B, OUT_PAD) store

    return kernel


# ----------------------------------------------------------------------------
# One-time (hoisted) parameter repack: bf16 tap-stacked conv weights, per-level
# edge masks, head gather matrix, (l, c)-packed w1 slab, lane-padded w2.
# ----------------------------------------------------------------------------
def prepare_params(params, *, depth, window_length, batch):
    conv_w, conv_b = params["conv_w"], params["conv_b"]
    rows = batch * window_length
    pos = jnp.arange(rows) % window_length

    inputs = []
    stride = 1
    for i, (w, b) in enumerate(zip(conv_w, conv_b)):
        Cout, Cin, K = w.shape
        assert K == 3 and Cin <= TAP and Cout <= TAP and 3 * TAP <= C_PAD
        w_st = jnp.zeros((C_PAD, C_PAD), jnp.float32)
        for k in range(3):          # k=0 -> x[l-1], k=1 -> x[l], k=2 -> x[l+1]
            w_st = w_st.at[k * TAP:k * TAP + Cin, :Cout].set(w[:, :, k].T)
        inputs.append(w_st.astype(jnp.bfloat16))
        inputs.append(jnp.zeros((1, C_PAD), jnp.float32).at[0, :Cout].set(b))
        inputs.append((pos >= stride).astype(jnp.float32)[:, None])                    # m_p
        inputs.append((pos < window_length - stride).astype(jnp.float32)[:, None])     # m_n
        if i < depth - 1:
            stride *= 2

    Lb = window_length // 2 ** (depth - 1)
    stride_f = 2 ** (depth - 1)
    C_bott = conv_w[-1].shape[0]
    H, bott_dim = params["w1"].shape
    num_classes = params["w2"].shape[0]
    assert bott_dim == C_bott * Lb

    # Gather matrix: output row l*B + b  <-  strided bottleneck row b*L0 + l*stride_f.
    gsel = jnp.zeros((Lb * batch, rows), jnp.float32)
    for l in range(Lb):
        for b in range(batch):
            gsel = gsel.at[l * batch + b, b * window_length + l * stride_f].set(1.0)
    inputs.append(gsel)

    # nn.Flatten on (B, C, Lb) indexes j = c*Lb + l; repack w1 rows into (l, c) order.
    w1r = jnp.transpose(params["w1"].reshape(H, C_bott, Lb), (2, 1, 0))      # (l, c, h)
    w1p = jnp.zeros((Lb, C_PAD, H_PAD), jnp.float32).at[:, :C_bott, :H].set(w1r)
    inputs.append(w1p.reshape(Lb * C_PAD, H_PAD).astype(jnp.bfloat16))
    inputs.append(jnp.zeros((1, H_PAD), jnp.float32).at[0, :H].set(params["b1"]))
    inputs.append(jnp.zeros((H_PAD, OUT_PAD), jnp.float32)
                  .at[:H, :num_classes].set(params["w2"].T).astype(jnp.bfloat16))
    inputs.append(jnp.zeros((1, OUT_PAD), jnp.float32)
                  .at[0, :num_classes].set(params["b2"]))
    return inputs, num_classes, Lb


def make_unet_fine_forward(params, *, depth, window_length, batch):
    weights, num_classes, Lb = prepare_params(
        params, depth=depth, window_length=window_length, batch=batch)

    @jax.jit
    def fwd(x_ncl):
        B, Cin, L0 = x_ncl.shape
        assert B == batch and L0 == window_length
        for i in range(depth - 1):
            assert (L0 // 2 ** i) % 2 == 0, "L must stay even at every pooled level"
        # channels-last rows = (b, l), lanes zero-padded to 128
        x2d = jnp.transpose(x_ncl, (0, 2, 1)).reshape(B * L0, Cin)
        x2d = jnp.pad(x2d, ((0, 0), (0, C_PAD - Cin)))
        kernel = _make_unet_kernel(B, L0, depth, Lb)
        out = pl.pallas_call(
            kernel,
            out_shape=jax.ShapeDtypeStruct((B, OUT_PAD), jnp.float32),
            in_specs=[_VMEM] * (1 + len(weights)),
            out_specs=_VMEM,
            # Resident footprint is ~0.3 MiB; an explicit limit keeps the scoped VMEM
            # budget honest on v7x (32 MiB default scoped / 64 MiB physical).
            compiler_params=pltpu.CompilerParams(vmem_limit_bytes=32 * 1024 * 1024),
        )(x2d, *weights)
        return out[:, :num_classes]

    return fwd


# ----------------------------------------------------------------------------
# Pure-JAX reference (mirrors the PyTorch module semantics, f32 throughout)
# ----------------------------------------------------------------------------
def reference_forward(x_ncl, params, depth):
    x = x_ncl
    for i, (w, b) in enumerate(zip(params["conv_w"], params["conv_b"])):
        x = jax.lax.conv_general_dilated(
            x, w, window_strides=(1,), padding=((1, 1),),
            dimension_numbers=("NCH", "OIH", "NCH"))
        x = jnp.maximum(x + b[None, :, None], 0.0)
        if i < depth - 1:
            B, C, L = x.shape
            x = x.reshape(B, C, L // 2, 2).max(axis=-1)
    x = x.reshape(x.shape[0], -1)
    x = _silu_ref(x)
    x = _silu_ref(x @ params["w1"].T + params["b1"])
    x = _silu_ref(x @ params["w2"].T + params["b2"])
    return x


# ----------------------------------------------------------------------------
# Deterministic parameter construction + run
# ----------------------------------------------------------------------------
if __name__ == "__main__":
    in_channels = 4
    depth = 3
    bottleneck_channels = 8
    window_length = 16
    hidden_dim = 30
    num_classes = 8
    batch = 2

    bottleneck_dim = bottleneck_channels * window_length // 2 ** (depth - 1)  # 32

    key = jax.random.PRNGKey(0)
    ks = jax.random.split(key, 2 * depth + 5)

    chans = [in_channels] + [bottleneck_channels] * depth  # [4, 8, 8, 8]
    conv_w, conv_b = [], []
    for i in range(depth):
        conv_w.append(0.2 * jax.random.normal(ks[2 * i], (chans[i + 1], chans[i], 3),
                                              dtype=jnp.float32))
        conv_b.append(0.1 * jax.random.normal(ks[2 * i + 1], (chans[i + 1],),
                                              dtype=jnp.float32))

    params = {
        "conv_w": conv_w,
        "conv_b": conv_b,
        "w1": 0.2 * jax.random.normal(ks[2 * depth + 0], (hidden_dim, bottleneck_dim),
                                      dtype=jnp.float32),
        "b1": 0.1 * jax.random.normal(ks[2 * depth + 1], (hidden_dim,), dtype=jnp.float32),
        "w2": 0.2 * jax.random.normal(ks[2 * depth + 2], (num_classes, hidden_dim),
                                      dtype=jnp.float32),
        "b2": 0.1 * jax.random.normal(ks[2 * depth + 3], (num_classes,), dtype=jnp.float32),
    }

    x = jax.random.normal(ks[2 * depth + 4], (batch, in_channels, window_length),
                          dtype=jnp.float32)

    fwd = make_unet_fine_forward(params, depth=depth, window_length=window_length,
                                 batch=batch)
    out = jax.block_until_ready(fwd(x))

    ref = reference_forward(x, params, depth)
    assert out.shape == (batch, num_classes), out.shape
    # bf16 MXU operands + approx reciprocal in SiLU -> tolerance relaxed vs f32 ref.
    assert jnp.allclose(out, ref, atol=2e-2, rtol=2e-2), (
        f"max abs err {jnp.max(jnp.abs(out - ref))}")

    print("KERNEL_OK")
</pallas_src>

<mosaic_0001>
module attributes {stable_mosaic.version = 11 : i64} {
  func.func @kernel(%arg0: memref<32x128xf32, #tpu.memory_space<vmem>>, %arg1: memref<128x128xbf16, #tpu.memory_space<vmem>>, %arg2: memref<1x128xf32, #tpu.memory_space<vmem>>, %arg3: memref<32x1xf32, #tpu.memory_space<vmem>>, %arg4: memref<32x1xf32, #tpu.memory_space<vmem>>, %arg5: memref<128x128xbf16, #tpu.memory_space<vmem>>, %arg6: memref<1x128xf32, #tpu.memory_space<vmem>>, %arg7: memref<32x1xf32, #tpu.memory_space<vmem>>, %arg8: memref<32x1xf32, #tpu.memory_space<vmem>>, %arg9: memref<128x128xbf16, #tpu.memory_space<vmem>>, %arg10: memref<1x128xf32, #tpu.memory_space<vmem>>, %arg11: memref<32x1xf32, #tpu.memory_space<vmem>>, %arg12: memref<32x1xf32, #tpu.memory_space<vmem>>, %arg13: memref<8x32xf32, #tpu.memory_space<vmem>>, %arg14: memref<512x128xbf16, #tpu.memory_space<vmem>>, %arg15: memref<1x128xf32, #tpu.memory_space<vmem>>, %arg16: memref<128x128xbf16, #tpu.memory_space<vmem>>, %arg17: memref<1x128xf32, #tpu.memory_space<vmem>>, %arg18: memref<2x128xf32, #tpu.memory_space<vmem>>) attributes {dimension_semantics = [], scalar_prefetch = 0 : i64, scratch_operands = 0 : i64, tpu.core_type = #tpu.core_type<tc>} {
    %c0 = arith.constant 0 : index
    %c0_0 = arith.constant 0 : index
    %0 = vector.load %arg0[%c0, %c0_0] : memref<32x128xf32, #tpu.memory_space<vmem>>, vector<32x128xf32>
    %c1_i32 = arith.constant 1 : i32
    %1 = tpu.dynamic_rotate %0 by %c1_i32 dim 0 : vector<32x128xf32>, i32 -> vector<32x128xf32>
    %c0_1 = arith.constant 0 : index
    %c0_2 = arith.constant 0 : index
    %2 = vector.load %arg3[%c0_1, %c0_2] : memref<32x1xf32, #tpu.memory_space<vmem>>, vector<32x1xf32>
    %3 = vector.broadcast %2 : vector<32x1xf32> to vector<32x128xf32>
    %4 = arith.mulf %1, %3 : vector<32x128xf32>
    %c31_i32 = arith.constant 31 : i32
    %5 = tpu.dynamic_rotate %0 by %c31_i32 dim 0 : vector<32x128xf32>, i32 -> vector<32x128xf32>
    %c0_3 = arith.constant 0 : index
    %c0_4 = arith.constant 0 : index
    %6 = vector.load %arg4[%c0_3, %c0_4] : memref<32x1xf32, #tpu.memory_space<vmem>>, vector<32x1xf32>
    %7 = vector.broadcast %6 : vector<32x1xf32> to vector<32x128xf32>
    %8 = arith.mulf %5, %7 : vector<32x128xf32>
    %c16_i32 = arith.constant 16 : i32
    %9 = tpu.dynamic_rotate %0 by %c16_i32 dim 1 : vector<32x128xf32>, i32 -> vector<32x128xf32>
    %10 = arith.addf %4, %9 : vector<32x128xf32>
    %c32_i32 = arith.constant 32 : i32
    %11 = tpu.dynamic_rotate %8 by %c32_i32 dim 1 : vector<32x128xf32>, i32 -> vector<32x128xf32>
    %12 = arith.addf %10, %11 : vector<32x128xf32>
    %13 = arith.truncf %12 : vector<32x128xf32> to vector<32x128xbf16>
    %c0_5 = arith.constant 0 : index
    %c0_6 = arith.constant 0 : index
    %14 = vector.load %arg1[%c0_5, %c0_6] : memref<128x128xbf16, #tpu.memory_space<vmem>>, vector<128x128xbf16>
    %cst = arith.constant dense<0.000000e+00> : vector<32x128xf32>
    %15 = tpu.matmul %13, %14, %cst {dimension_numbers = #tpu.dot_dimension_numbers<[1], [0], [0], [1], [0, 0, 1, 1], [], []>} : vector<32x128xbf16>, vector<128x128xbf16>, vector<32x128xf32> -> vector<32x128xf32>
    %c0_7 = arith.constant 0 : index
    %c0_8 = arith.constant 0 : index
    %16 = vector.load %arg2[%c0_7, %c0_8] : memref<1x128xf32, #tpu.memory_space<vmem>>, vector<1x128xf32>
    %17 = vector.broadcast %16 : vector<1x128xf32> to vector<32x128xf32>
    %18 = arith.addf %15, %17 : vector<32x128xf32>
    %cst_9 = arith.constant 0.000000e+00 : f32
    %19 = vector.broadcast %cst_9 : f32 to vector<32x128xf32>
    %20 = arith.maximumf %18, %19 : vector<32x128xf32>
    %c31_i32_10 = arith.constant 31 : i32
    %21 = tpu.dynamic_rotate %20 by %c31_i32_10 dim 0 : vector<32x128xf32>, i32 -> vector<32x128xf32>
    %22 = arith.maximumf %20, %21 : vector<32x128xf32>
    %c2_i32 = arith.constant 2 : i32
    %23 = tpu.dynamic_rotate %22 by %c2_i32 dim 0 : vector<32x128xf32>, i32 -> vector<32x128xf32>
    %c0_11 = arith.constant 0 : index
    %c0_12 = arith.constant 0 : index
    %24 = vector.load %arg7[%c0_11, %c0_12] : memref<32x1xf32, #tpu.memory_space<vmem>>, vector<32x1xf32>
    %25 = vector.broadcast %24 : vector<32x1xf32> to vector<32x128xf32>
    %26 = arith.mulf %23, %25 : vector<32x128xf32>
    %c30_i32 = arith.constant 30 : i32
    %27 = tpu.dynamic_rotate %22 by %c30_i32 dim 0 : vector<32x128xf32>, i32 -> vector<32x128xf32>
    %c0_13 = arith.constant 0 : index
    %c0_14 = arith.constant 0 : index
    %28 = vector.load %arg8[%c0_13, %c0_14] : memref<32x1xf32, #tpu.memory_space<vmem>>, vector<32x1xf32>
    %29 = vector.broadcast %28 : vector<32x1xf32> to vector<32x128xf32>
    %30 = arith.mulf %27, %29 : vector<32x128xf32>
    %c16_i32_15 = arith.constant 16 : i32
    %31 = tpu.dynamic_rotate %22 by %c16_i32_15 dim 1 : vector<32x128xf32>, i32 -> vector<32x128xf32>
    %32 = arith.addf %26, %31 : vector<32x128xf32>
    %c32_i32_16 = arith.constant 32 : i32
    %33 = tpu.dynamic_rotate %30 by %c32_i32_16 dim 1 : vector<32x128xf32>, i32 -> vector<32x128xf32>
    %34 = arith.addf %32, %33 : vector<32x128xf32>
    %35 = arith.truncf %34 : vector<32x128xf32> to vector<32x128xbf16>
    %c0_17 = arith.constant 0 : index
    %c0_18 = arith.constant 0 : index
    %36 = vector.load %arg5[%c0_17, %c0_18] : memref<128x128xbf16, #tpu.memory_space<vmem>>, vector<128x128xbf16>
    %cst_19 = arith.constant dense<0.000000e+00> : vector<32x128xf32>
    %37 = tpu.matmul %35, %36, %cst_19 {dimension_numbers = #tpu.dot_dimension_numbers<[1], [0], [0], [1], [0, 0, 1, 1], [], []>} : vector<32x128xbf16>, vector<128x128xbf16>, vector<32x128xf32> -> vector<32x128xf32>
    %c0_20 = arith.constant 0 : index
    %c0_21 = arith.constant 0 : index
    %38 = vector.load %arg6[%c0_20, %c0_21] : memref<1x128xf32, #tpu.memory_space<vmem>>, vector<1x128xf32>
    %39 = vector.broadcast %38 : vector<1x128xf32> to vector<32x128xf32>
    %40 = arith.addf %37, %39 : vector<32x128xf32>
    %cst_22 = arith.constant 0.000000e+00 : f32
    %41 = vector.broadcast %cst_22 : f32 to vector<32x128xf32>
    %42 = arith.maximumf %40, %41 : vector<32x128xf32>
    %c30_i32_23 = arith.constant 30 : i32
    %43 = tpu.dynamic_rotate %42 by %c30_i32_23 dim 0 : vector<32x128xf32>, i32 -> vector<32x128xf32>
    %44 = arith.maximumf %42, %43 : vector<32x128xf32>
    %c4_i32 = arith.constant 4 : i32
    %45 = tpu.dynamic_rotate %44 by %c4_i32 dim 0 : vector<32x128xf32>, i32 -> vector<32x128xf32>
    %c0_24 = arith.constant 0 : index
    %c0_25 = arith.constant 0 : index
    %46 = vector.load %arg11[%c0_24, %c0_25] : memref<32x1xf32, #tpu.memory_space<vmem>>, vector<32x1xf32>
    %47 = vector.broadcast %46 : vector<32x1xf32> to vector<32x128xf32>
    %48 = arith.mulf %45, %47 : vector<32x128xf32>
    %c28_i32 = arith.constant 28 : i32
    %49 = tpu.dynamic_rotate %44 by %c28_i32 dim 0 : vector<32x128xf32>, i32 -> vector<32x128xf32>
    %c0_26 = arith.constant 0 : index
    %c0_27 = arith.constant 0 : index
    %50 = vector.load %arg12[%c0_26, %c0_27] : memref<32x1xf32, #tpu.memory_space<vmem>>, vector<32x1xf32>
    %51 = vector.broadcast %50 : vector<32x1xf32> to vector<32x128xf32>
    %52 = arith.mulf %49, %51 : vector<32x128xf32>
    %c16_i32_28 = arith.constant 16 : i32
    %53 = tpu.dynamic_rotate %44 by %c16_i32_28 dim 1 : vector<32x128xf32>, i32 -> vector<32x128xf32>
    %54 = arith.addf %48, %53 : vector<32x128xf32>
    %c32_i32_29 = arith.constant 32 : i32
    %55 = tpu.dynamic_rotate %52 by %c32_i32_29 dim 1 : vector<32x128xf32>, i32 -> vector<32x128xf32>
    %56 = arith.addf %54, %55 : vector<32x128xf32>
    %57 = arith.truncf %56 : vector<32x128xf32> to vector<32x128xbf16>
    %c0_30 = arith.constant 0 : index
    %c0_31 = arith.constant 0 : index
    %58 = vector.load %arg9[%c0_30, %c0_31] : memref<128x128xbf16, #tpu.memory_space<vmem>>, vector<128x128xbf16>
    %cst_32 = arith.constant dense<0.000000e+00> : vector<32x128xf32>
    %59 = tpu.matmul %57, %58, %cst_32 {dimension_numbers = #tpu.dot_dimension_numbers<[1], [0], [0], [1], [0, 0, 1, 1], [], []>} : vector<32x128xbf16>, vector<128x128xbf16>, vector<32x128xf32> -> vector<32x128xf32>
    %c0_33 = arith.constant 0 : index
    %c0_34 = arith.constant 0 : index
    %60 = vector.load %arg10[%c0_33, %c0_34] : memref<1x128xf32, #tpu.memory_space<vmem>>, vector<1x128xf32>
    %61 = vector.broadcast %60 : vector<1x128xf32> to vector<32x128xf32>
    %62 = arith.addf %59, %61 : vector<32x128xf32>
    %cst_35 = arith.constant 0.000000e+00 : f32
    %63 = vector.broadcast %cst_35 : f32 to vector<32x128xf32>
    %64 = arith.maximumf %62, %63 : vector<32x128xf32>
    %c0_36 = arith.constant 0 : index
    %c0_37 = arith.constant 0 : index
    %65 = vector.load %arg13[%c0_36, %c0_37] : memref<8x32xf32, #tpu.memory_space<vmem>>, vector<8x32xf32>
    %cst_38 = arith.constant dense<0.000000e+00> : vector<8x128xf32>
    %66 = tpu.matmul %65, %64, %cst_38 {dimension_numbers = #tpu.dot_dimension_numbers<[1], [0], [0], [1], [0, 0, 1, 1], [], []>} : vector<8x32xf32>, vector<32x128xf32>, vector<8x128xf32> -> vector<8x128xf32>
    %cst_39 = arith.constant 0.000000e+00 : f32
    %67 = vector.broadcast %cst_39 : f32 to vector<8x128xf32>
    %68 = arith.subf %67, %66 : vector<8x128xf32>
    %69 = math.exp %68 : vector<8x128xf32>
    %cst_40 = arith.constant 1.000000e+00 : f32
    %70 = vector.broadcast %cst_40 : f32 to vector<8x128xf32>
    %71 = arith.addf %70, %69 : vector<8x128xf32>
    %72 = tpu.reciprocal %71 {approx = true} : vector<8x128xf32> -> vector<8x128xf32>
    %73 = arith.mulf %66, %72 : vector<8x128xf32>
    %cst_41 = arith.constant 0.000000e+00 : f32
    %74 = vector.broadcast %cst_41 : f32 to vector<2x128xf32>
    %75 = vector.extract_strided_slice %73 {offsets = [0, 0], sizes = [2, 128], strides = [1, 1]} : vector<8x128xf32> to vector<2x128xf32>
    %76 = arith.truncf %75 : vector<2x128xf32> to vector<2x128xbf16>
    %c0_42 = arith.constant 0 : index
    %c0_43 = arith.constant 0 : index
    %77 = vector.load %arg14[%c0_42, %c0_43] : memref<512x128xbf16, #tpu.memory_space<vmem>>, vector<128x128xbf16>
    %cst_44 = arith.constant dense<0.000000e+00> : vector<2x128xf32>
    %78 = tpu.matmul %76, %77, %cst_44 {dimension_numbers = #tpu.dot_dimension_numbers<[1], [0], [0], [1], [0, 0, 1, 1], [], []>} : vector<2x128xbf16>, vector<128x128xbf16>, vector<2x128xf32> -> vector<2x128xf32>
    %79 = arith.addf %74, %78 : vector<2x128xf32>
    %80 = vector.extract_strided_slice %73 {offsets = [2, 0], sizes = [2, 128], strides = [1, 1]} : vector<8x128xf32> to vector<2x128xf32>
    %81 = arith.truncf %80 : vector<2x128xf32> to vector<2x128xbf16>
    %c128 = arith.constant 128 : index
    %c0_45 = arith.constant 0 : index
    %82 = vector.load %arg14[%c128, %c0_45] : memref<512x128xbf16, #tpu.memory_space<vmem>>, vector<128x128xbf16>
    %cst_46 = arith.constant dense<0.000000e+00> : vector<2x128xf32>
    %83 = tpu.matmul %81, %82, %cst_46 {dimension_numbers = #tpu.dot_dimension_numbers<[1], [0], [0], [1], [0, 0, 1, 1], [], []>} : vector<2x128xbf16>, vector<128x128xbf16>, vector<2x128xf32> -> vector<2x128xf32>
    %84 = arith.addf %79, %83 : vector<2x128xf32>
    %85 = vector.extract_strided_slice %73 {offsets = [4, 0], sizes = [2, 128], strides = [1, 1]} : vector<8x128xf32> to vector<2x128xf32>
    %86 = arith.truncf %85 : vector<2x128xf32> to vector<2x128xbf16>
    %c256 = arith.constant 256 : index
    %c0_47 = arith.constant 0 : index
    %87 = vector.load %arg14[%c256, %c0_47] : memref<512x128xbf16, #tpu.memory_space<vmem>>, vector<128x128xbf16>
    %cst_48 = arith.constant dense<0.000000e+00> : vector<2x128xf32>
    %88 = tpu.matmul %86, %87, %cst_48 {dimension_numbers = #tpu.dot_dimension_numbers<[1], [0], [0], [1], [0, 0, 1, 1], [], []>} : vector<2x128xbf16>, vector<128x128xbf16>, vector<2x128xf32> -> vector<2x128xf32>
    %89 = arith.addf %84, %88 : vector<2x128xf32>
    %90 = vector.extract_strided_slice %73 {offsets = [6, 0], sizes = [2, 128], strides = [1, 1]} : vector<8x128xf32> to vector<2x128xf32>
    %91 = arith.truncf %90 : vector<2x128xf32> to vector<2x128xbf16>
    %c384 = arith.constant 384 : index
    %c0_49 = arith.constant 0 : index
    %92 = vector.load %arg14[%c384, %c0_49] : memref<512x128xbf16, #tpu.memory_space<vmem>>, vector<128x128xbf16>
    %cst_50 = arith.constant dense<0.000000e+00> : vector<2x128xf32>
    %93 = tpu.matmul %91, %92, %cst_50 {dimension_numbers = #tpu.dot_dimension_numbers<[1], [0], [0], [1], [0, 0, 1, 1], [], []>} : vector<2x128xbf16>, vector<128x128xbf16>, vector<2x128xf32> -> vector<2x128xf32>
    %94 = arith.addf %89, %93 : vector<2x128xf32>
    %c0_51 = arith.constant 0 : index
    %c0_52 = arith.constant 0 : index
    %95 = vector.load %arg15[%c0_51, %c0_52] : memref<1x128xf32, #tpu.memory_space<vmem>>, vector<1x128xf32>
    %96 = vector.broadcast %95 : vector<1x128xf32> to vector<2x128xf32>
    %97 = arith.addf %94, %96 : vector<2x128xf32>
    %cst_53 = arith.constant 0.000000e+00 : f32
    %98 = vector.broadcast %cst_53 : f32 to vector<2x128xf32>
    %99 = arith.subf %98, %97 : vector<2x128xf32>
    %100 = math.exp %99 : vector<2x128xf32>
    %cst_54 = arith.constant 1.000000e+00 : f32
    %101 = vector.broadcast %cst_54 : f32 to vector<2x128xf32>
    %102 = arith.addf %101, %100 : vector<2x128xf32>
    %103 = tpu.reciprocal %102 {approx = true} : vector<2x128xf32> -> vector<2x128xf32>
    %104 = arith.mulf %97, %103 : vector<2x128xf32>
    %105 = arith.truncf %104 : vector<2x128xf32> to vector<2x128xbf16>
    %c0_55 = arith.constant 0 : index
    %c0_56 = arith.constant 0 : index
    %106 = vector.load %arg16[%c0_55, %c0_56] : memref<128x128xbf16, #tpu.memory_space<vmem>>, vector<128x128xbf16>
    %cst_57 = arith.constant dense<0.000000e+00> : vector<2x128xf32>
    %107 = tpu.matmul %105, %106, %cst_57 {dimension_numbers = #tpu.dot_dimension_numbers<[1], [0], [0], [1], [0, 0, 1, 1], [], []>} : vector<2x128xbf16>, vector<128x128xbf16>, vector<2x128xf32> -> vector<2x128xf32>
    %c0_58 = arith.constant 0 : index
    %c0_59 = arith.constant 0 : index
    %108 = vector.load %arg17[%c0_58, %c0_59] : memref<1x128xf32, #tpu.memory_space<vmem>>, vector<1x128xf32>
    %109 = vector.broadcast %108 : vector<1x128xf32> to vector<2x128xf32>
    %110 = arith.addf %107, %109 : vector<2x128xf32>
    %cst_60 = arith.constant 0.000000e+00 : f32
    %111 = vector.broadcast %cst_60 : f32 to vector<2x128xf32>
    %112 = arith.subf %111, %110 : vector<2x128xf32>
    %113 = math.exp %112 : vector<2x128xf32>
    %cst_61 = arith.constant 1.000000e+00 : f32
    %114 = vector.broadcast %cst_61 : f32 to vector<2x128xf32>
    %115 = arith.addf %114, %113 : vector<2x128xf32>
    %116 = tpu.reciprocal %115 {approx = true} : vector<2x128xf32> -> vector<2x128xf32>
    %117 = arith.mulf %110, %116 : vector<2x128xf32>
    %c0_62 = arith.constant 0 : index
    %c0_63 = arith.constant 0 : index
    %118 = vector.load %arg18[%c0_62, %c0_63] : memref<2x128xf32, #tpu.memory_space<vmem>>, vector<2x128xf32>
    tpu.vector_store %arg18[%c0_62, %c0_63], %117 {strides = array<i32>} : memref<2x128xf32, #tpu.memory_space<vmem>>, vector<2x128xf32>,
    return
  }
}

</mosaic_0001>

<llo_original>
// kernel: fwd.1
$region0: #{fwd.1}
  #allocation0 [shape = 'u32[]', space=smem, size = 0x4, offset = 0x4, fixed_abs, tag = 'smem constant byte address 0x4 - core index']
  #allocation1 [shape = 'u32[72,128]{1,0:T(1,128)}', space=vmem, size = 0x9000, scoped, tag = 'internal scratch']
  %s0 = inlined_call_operand.vmem [shape: f32[32,128], index: 0, kind: input, shape index: {}]
  %s1 = inlined_call_operand.hbm [shape: bf16[128,128], index: 1, kind: input, shape index: {}]
  %s2 = inlined_call_operand.vmem [shape: f32[1,128], index: 2, kind: input, shape index: {}]
  %s3 = inlined_call_operand.hbm [shape: f32[32,1], index: 3, kind: input, shape index: {}]
  %s4 = inlined_call_operand.hbm [shape: f32[32,1], index: 4, kind: input, shape index: {}]
  %s5 = inlined_call_operand.hbm [shape: bf16[128,128], index: 5, kind: input, shape index: {}]
  %s6 = inlined_call_operand.vmem [shape: f32[1,128], index: 6, kind: input, shape index: {}]
  %s7 = inlined_call_operand.hbm [shape: f32[32,1], index: 7, kind: input, shape index: {}]
  %s8 = inlined_call_operand.hbm [shape: f32[32,1], index: 8, kind: input, shape index: {}]
  %s9 = inlined_call_operand.hbm [shape: bf16[128,128], index: 9, kind: input, shape index: {}]
  %s10 = inlined_call_operand.vmem [shape: f32[1,128], index: 10, kind: input, shape index: {}]
  %s11 = inlined_call_operand.hbm [shape: f32[32,1], index: 11, kind: input, shape index: {}]
  %s12 = inlined_call_operand.vmem [shape: f32[32,1], index: 12, kind: input, shape index: {}]
  %s13 = inlined_call_operand.vmem [shape: f32[8,32], index: 13, kind: input, shape index: {}]
  %s14 = inlined_call_operand.hbm [shape: bf16[512,128], index: 14, kind: input, shape index: {}]
  %s15 = inlined_call_operand.vmem [shape: f32[1,128], index: 15, kind: input, shape index: {}]
  %s16 = inlined_call_operand.vmem [shape: bf16[128,128], index: 16, kind: input, shape index: {}]
  %s17 = inlined_call_operand.vmem [shape: f32[1,128], index: 17, kind: input, shape index: {}]
  %s18 = inlined_call_operand.hbm [shape: f32[2,128], index: 18, kind: output, shape index: {}]
  %s19 = sld [smem:[#allocation0]]
  $region118: #{fwd.1} parent=0
    _
  %s21 = ssub.s32 1, %s19
  %s22 = scalar_select 0, %s21, %s19
  $region1: #{fwd.1} parent=0
    #allocation2 [shape = 'u8[32768]{0}', space=vmem, size = 0x8000, scoped, tag = 'input window, operand 1, single buffered']
    #allocation3 [shape = 's32[1]{0}', space=sflag, size = 0x4, scoped, tag = 'scoped memory for fwd.1']
    #allocation4 [shape = 's32[1]{0}', space=sflag, size = 0x4, scoped, tag = 'scoped memory for fwd.1']
    #allocation5 [shape = 'u8[16384]{0}', space=vmem, size = 0x4000, scoped, tag = 'input window, operand 3, single buffered']
    #allocation6 [shape = 's32[1]{0}', space=sflag, size = 0x4, scoped, tag = 'scoped memory for fwd.1']
    #allocation7 [shape = 'u8[16384]{0}', space=vmem, size = 0x4000, scoped, tag = 'input window, operand 4, single buffered']
    #allocation8 [shape = 'u8[32768]{0}', space=vmem, size = 0x8000, scoped, tag = 'input window, operand 5, single buffered']
    #allocation9 [shape = 's32[1]{0}', space=sflag, size = 0x4, scoped, tag = 'scoped memory for fwd.1']
    #allocation10 [shape = 'u8[16384]{0}', space=vmem, size = 0x4000, scoped, tag = 'input window, operand 7, single buffered']
    #allocation11 [shape = 'u8[16384]{0}', space=vmem, size = 0x4000, scoped, tag = 'input window, operand 8, single buffered']
    #allocation12 [shape = 's32[1]{0}', space=sflag, size = 0x4, scoped, tag = 'scoped memory for fwd.1']
    #allocation13 [shape = 'u8[32768]{0}', space=vmem, size = 0x8000, scoped, tag = 'input window, operand 9, single buffered']
    #allocation14 [shape = 'u8[16384]{0}', space=vmem, size = 0x4000, scoped, tag = 'input window, operand 11, single buffered']
    #allocation15 [shape = 's32[1]{0}', space=sflag, size = 0x4, scoped, tag = 'scoped memory for fwd.1']
    #allocation16 [shape = 'u8[131072]{0}', space=vmem, size = 0x20000, scoped, tag = 'input window, operand 14, single buffered']
    #allocation17 [shape = 'u8[1024]{0}', space=vmem, size = 0x400, scoped, tag = 'output window, operand 0, single buffered']
    %23 = vsyncpa [#allocation3], 0
    %24 = vsyncpa [#allocation6], 0
    %25 = vsyncpa [#allocation9], 0
    %26 = vsyncpa [#allocation12], 0
    %27 = vsyncpa [#allocation15], 0
    %28 = vsyncpa [#allocation4], 0
    // Predicated region
    $region2: #{fwd.1} parent=1 // pred_check
      _
    $region3: #{fwd.1} parent=1 // pred_check_branch
      %30 = sbr.rel (0) target = $region5
    $region4: #{fwd.1} parent=1 // pred_region
      _
    $region5: #{fwd.1} parent=1 // pred_fallthru
      _
    // Predicated region
    $region6: #{fwd.1} parent=1 // pred_check
      _
    $region7: #{fwd.1} parent=1 // pred_check_branch
      %32 = sbr.rel (0) target = $region9
    $region8: #{fwd.1} parent=1 // pred_region
      %34 = vsyncadd [#allocation3], 0
      %s35 = sshll.u32 %s1, 4
      %s36 = int_to_ptr.hbm [resolvable:$true] %s35
      %s37 = sshll.u32 [#allocation2], 4
      %s38 = int_to_ptr.vmem [resolvable:$true] %s37
      %43 = dma.hbm_to_vmem [thread:$0]  %s36, 1024, %s38, [#allocation3], 64, 64, 4
    $region9: #{fwd.1} parent=1 // pred_fallthru
      _
    // Predicated region
    $region10: #{fwd.1} parent=1 // pred_check
      _
    $region11: #{fwd.1} parent=1 // pred_check_branch
      %45 = sbr.rel (0) target = $region13
    $region12: #{fwd.1} parent=1 // pred_region
      _
    $region13: #{fwd.1} parent=1 // pred_fallthru
      _
    // Predicated region
    $region14: #{fwd.1} parent=1 // pred_check
      _
    $region15: #{fwd.1} parent=1 // pred_check_branch
      %47 = sbr.rel (0) target = $region17
    $region16: #{fwd.1} parent=1 // pred_region
      %49 = vsyncadd [#allocation6], 0
      %s50 = sshll.u32 %s3, 4
      %s51 = int_to_ptr.hbm [resolvable:$true] %s50
      %s52 = sshll.u32 [#allocation5], 4
      %s53 = int_to_ptr.vmem [resolvable:$true] %s52
      %58 = dma.hbm_to_vmem [thread:$0]  %s51, 512, %s53, [#allocation6], 128, 128, 8
    $region17: #{fwd.1} parent=1 // pred_fallthru
      _
    // Predicated region
    $region18: #{fwd.1} parent=1 // pred_check
      _
    $region19: #{fwd.1} parent=1 // pred_check_branch
      %60 = sbr.rel (0) target = $region21
    $region20: #{fwd.1} parent=1 // pred_region
      %62 = vsyncadd [#allocation6], 0
      %s63 = sshll.u32 %s4, 4
      %s64 = int_to_ptr.hbm [resolvable:$true] %s63
      %s65 = sshll.u32 [#allocation7], 4
      %s66 = int_to_ptr.vmem [resolvable:$true] %s65
      %71 = dma.hbm_to_vmem [thread:$0]  %s64, 512, %s66, [#allocation6], 128, 128, 8
    $region21: #{fwd.1} parent=1 // pred_fallthru
      _
    // Predicated region
    $region22: #{fwd.1} parent=1 // pred_check
      _
    $region23: #{fwd.1} parent=1 // pred_check_branch
      %73 = sbr.rel (0) target = $region25
    $region24: #{fwd.1} parent=1 // pred_region
      %75 = vsyncadd [#allocation9], 0
      %s76 = sshll.u32 %s5, 4
      %s77 = int_to_ptr.hbm [resolvable:$true] %s76
      %s78 = sshll.u32 [#allocation8], 4
      %s79 = int_to_ptr.vmem [resolvable:$true] %s78
      %84 = dma.hbm_to_vmem [thread:$0]  %s77, 1024, %s79, [#allocation9], 64, 64, 4
    $region25: #{fwd.1} parent=1 // pred_fallthru
      _
    // Predicated region
    $region26: #{fwd.1} parent=1 // pred_check
      _
    $region27: #{fwd.1} parent=1 // pred_check_branch
      %86 = sbr.rel (0) target = $region29
    $region28: #{fwd.1} parent=1 // pred_region
      _
    $region29: #{fwd.1} parent=1 // pred_fallthru
      _
    // Predicated region
    $region30: #{fwd.1} parent=1 // pred_check
      _
    $region31: #{fwd.1} parent=1 // pred_check_branch
      %88 = sbr.rel (0) target = $region33
    $region32: #{fwd.1} parent=1 // pred_region
      %90 = vsyncadd [#allocation9], 0
      %s91 = sshll.u32 %s7, 4
      %s92 = int_to_ptr.hbm [resolvable:$true] %s91
      %s93 = sshll.u32 [#allocation10], 4
      %s94 = int_to_ptr.vmem [resolvable:$true] %s93
      %99 = dma.hbm_to_vmem [thread:$0]  %s92, 512, %s94, [#allocation9], 128, 128, 8
    $region33: #{fwd.1} parent=1 // pred_fallthru
      _
    // Predicated region
    $region34: #{fwd.1} parent=1 // pred_check
      _
    $region35: #{fwd.1} parent=1 // pred_check_branch
      %101 = sbr.rel (0) target = $region37
    $region36: #{fwd.1} parent=1 // pred_region
      %103 = vsyncadd [#allocation12], 0
      %s104 = sshll.u32 %s8, 4
      %s105 = int_to_ptr.hbm [resolvable:$true] %s104
      %s106 = sshll.u32 [#allocation11], 4
      %s107 = int_to_ptr.vmem [resolvable:$true] %s106
      %112 = dma.hbm_to_vmem [thread:$0]  %s105, 512, %s107, [#allocation12], 128, 128, 8
    $region37: #{fwd.1} parent=1 // pred_fallthru
      _
    // Predicated region
    $region38: #{fwd.1} parent=1 // pred_check
      _
    $region39: #{fwd.1} parent=1 // pred_check_branch
      %114 = sbr.rel (0) target = $region41
    $region40: #{fwd.1} parent=1 // pred_region
      %116 = vsyncadd [#allocation12], 0
      %s117 = sshll.u32 %s9, 4
      %s118 = int_to_ptr.hbm [resolvable:$true] %s117
      %s119 = sshll.u32 [#allocation13], 4
      %s120 = int_to_ptr.vmem [resolvable:$true] %s119
      %125 = dma.hbm_to_vmem [thread:$0]  %s118, 1024, %s120, [#allocation12], 64, 64, 4
    $region41: #{fwd.1} parent=1 // pred_fallthru
      _
    // Predicated region
    $region42: #{fwd.1} parent=1 // pred_check
      _
    $region43: #{fwd.1} parent=1 // pred_check_branch
      %127 = sbr.rel (0) target = $region45
    $region44: #{fwd.1} parent=1 // pred_region
      _
    $region45: #{fwd.1} parent=1 // pred_fallthru
      _
    // Predicated region
    $region46: #{fwd.1} parent=1 // pred_check
      _
    $region47: #{fwd.1} parent=1 // pred_check_branch
      %129 = sbr.rel (0) target = $region49
    $region48: #{fwd.1} parent=1 // pred_region
      %131 = vsyncadd [#allocation15], 0
      %s132 = sshll.u32 %s11, 4
      %s133 = int_to_ptr.hbm [resolvable:$true] %s132
      %s134 = sshll.u32 [#allocation14], 4
      %s135 = int_to_ptr.vmem [resolvable:$true] %s134
      %140 = dma.hbm_to_vmem [thread:$0]  %s133, 512, %s135, [#allocation15], 128, 128, 8
    $region49: #{fwd.1} parent=1 // pred_fallthru
      _
    // Predicated region
    $region50: #{fwd.1} parent=1 // pred_check
      _
    $region51: #{fwd.1} parent=1 // pred_check_branch
      %142 = sbr.rel (0) target = $region53
    $region52: #{fwd.1} parent=1 // pred_region
      _
    $region53: #{fwd.1} parent=1 // pred_fallthru
      _
    // Predicated region
    $region54: #{fwd.1} parent=1 // pred_check
      _
    $region55: #{fwd.1} parent=1 // pred_check_branch
      %144 = sbr.rel (0) target = $region57
    $region56: #{fwd.1} parent=1 // pred_region
      _
    $region57: #{fwd.1} parent=1 // pred_fallthru
      _
    // Predicated region
    $region58: #{fwd.1} parent=1 // pred_check
      _
    $region59: #{fwd.1} parent=1 // pred_check_branch
      %146 = sbr.rel (0) target = $region61
    $region60: #{fwd.1} parent=1 // pred_region
      %148 = vsyncadd [#allocation15], 0
      %s149 = sshll.u32 %s14, 4
      %s150 = int_to_ptr.hbm [resolvable:$true] %s149
      %s151 = sshll.u32 [#allocation16], 4
      %s152 = int_to_ptr.vmem [resolvable:$true] %s151
      %157 = dma.hbm_to_vmem [thread:$0]  %s150, 4096, %s152, [#allocation15], 64, 64, 4
    $region61: #{fwd.1} parent=1 // pred_fallthru
      _
    // Predicated region
    $region62: #{fwd.1} parent=1 // pred_check
      _
    $region63: #{fwd.1} parent=1 // pred_check_branch
      %159 = sbr.rel (0) target = $region65
    $region64: #{fwd.1} parent=1 // pred_region
      _
    $region65: #{fwd.1} parent=1 // pred_fallthru
      _
    // Predicated region
    $region66: #{fwd.1} parent=1 // pred_check
      _
    $region67: #{fwd.1} parent=1 // pred_check_branch
      %161 = sbr.rel (0) target = $region69
    $region68: #{fwd.1} parent=1 // pred_region
      _
    $region69: #{fwd.1} parent=1 // pred_fallthru
      _
    // Predicated region
    $region70: #{fwd.1} parent=1 // pred_check
      _
    $region71: #{fwd.1} parent=1 // pred_check_branch
      %163 = sbr.rel (0) target = $region73
    $region72: #{fwd.1} parent=1 // pred_region
      _
    $region73: #{fwd.1} parent=1 // pred_fallthru
      _
    // Predicated region
    $region74: #{fwd.1} parent=1 // pred_check
      _
    $region75: #{fwd.1} parent=1 // pred_check_branch
      %165 = sbr.rel (0) target = $region77
    $region76: #{fwd.1} parent=1 // pred_region
      %167 = dma.done [#allocation3], 1024
    $region77: #{fwd.1} parent=1 // pred_fallthru
      _
    // Predicated region
    $region78: #{fwd.1} parent=1 // pred_check
      _
    $region79: #{fwd.1} parent=1 // pred_check_branch
      %169 = sbr.rel (0) target = $region81
    $region80: #{fwd.1} parent=1 // pred_region
      %171 = dma.done [#allocation6], 512
    $region81: #{fwd.1} parent=1 // pred_fallthru
      _
    // Predicated region
    $region82: #{fwd.1} parent=1 // pred_check
      _
    $region83: #{fwd.1} parent=1 // pred_check_branch
      %173 = sbr.rel (0) target = $region85
    $region84: #{fwd.1} parent=1 // pred_region
      %175 = dma.done [#allocation6], 512
    $region85: #{fwd.1} parent=1 // pred_fallthru
      _
    // Predicated region
    $region86: #{fwd.1} parent=1 // pred_check
      _
    $region87: #{fwd.1} parent=1 // pred_check_branch
      %177 = sbr.rel (0) target = $region89
    $region88: #{fwd.1} parent=1 // pred_region
      %179 = dma.done [#allocation9], 1024
    $region89: #{fwd.1} parent=1 // pred_fallthru
      _
    // Predicated region
    $region90: #{fwd.1} parent=1 // pred_check
      _
    $region91: #{fwd.1} parent=1 // pred_check_branch
      %181 = sbr.rel (0) target = $region93
    $region92: #{fwd.1} parent=1 // pred_region
      %183 = dma.done [#allocation9], 512
    $region93: #{fwd.1} parent=1 // pred_fallthru
      _
    // Predicated region
    $region94: #{fwd.1} parent=1 // pred_check
      _
    $region95: #{fwd.1} parent=1 // pred_check_branch
      %185 = sbr.rel (0) target = $region97
    $region96: #{fwd.1} parent=1 // pred_region
      %187 = dma.done [#allocation12], 512
    $region97: #{fwd.1} parent=1 // pred_fallthru
      _
    // Predicated region
    $region98: #{fwd.1} parent=1 // pred_check
      _
    $region99: #{fwd.1} parent=1 // pred_check_branch
      %189 = sbr.rel (0) target = $region101
    $region100: #{fwd.1} parent=1 // pred_region
      %191 = dma.done [#allocation12], 1024
    $region101: #{fwd.1} parent=1 // pred_fallthru
      _
    // Predicated region
    $region102: #{fwd.1} parent=1 // pred_check
      _
    $region103: #{fwd.1} parent=1 // pred_check_branch
      %193 = sbr.rel (0) target = $region105
    $region104: #{fwd.1} parent=1 // pred_region
      %195 = dma.done [#allocation15], 512
    $region105: #{fwd.1} parent=1 // pred_fallthru
      _
    // Predicated region
    $region106: #{fwd.1} parent=1 // pred_check
      _
    $region107: #{fwd.1} parent=1 // pred_check_branch
      %197 = sbr.rel (0) target = $region109
    $region108: #{fwd.1} parent=1 // pred_region
      %199 = dma.done [#allocation15], 4096
    $region109: #{fwd.1} parent=1 // pred_fallthru
      _
    %v200 = vld [vmem:[%s0] sm:$0xff]
    %v201 = vld [vmem:[%s0 + $0x8] sm:$0xff]
    %v202 = vld [vmem:[%s0 + $0x10] sm:$0xff]
    %v203 = vld [vmem:[%s0 + $0x18] sm:$0xff]
    %v204 = vrot.slane %v200, 7
    %v205 = vrot.slane %v201, 7
    %v206 = vrot.slane %v202, 7
    %v207 = vrot.slane %v203, 7
    %v208 = vlaneseq
    %v209 = vshrl.u32 %v208, 7
    %vm210 = vcmp.lt.s32.totalorder %v209, 1
    %v211 = vsel %vm210, %v206, %v207
    %v212 = vsel %vm210, %v205, %v206
    %v213 = vsel %vm210, %v204, %v205
    %v214 = vsel %vm210, %v207, %v204
    %v215 = vld [vmem:[#allocation5] sm:$0xff]
    %v216 = vld [vmem:[#allocation5 + $0x8] sm:$0xff]
    %v217 = vld [vmem:[#allocation5 + $0x10] sm:$0xff]
    %v218 = vld [vmem:[#allocation5 + $0x18] sm:$0xff]
    %220 = vset.pattern.permute.xlu0 0
    %221 = vperm.xlu0 %220, %v215
    %v222 = vpop.permute.xlu0 %221
    %225 = vset.pattern.permute.xlu0 0
    %226 = vperm.xlu0 %225, %v216
    %v227 = vpop.permute.xlu0 %226
    %230 = vset.pattern.permute.xlu0 0
    %231 = vperm.xlu0 %230, %v217
    %v232 = vpop.permute.xlu0 %231
    %235 = vset.pattern.permute.xlu0 0
    %236 = vperm.xlu0 %235, %v218
    %v237 = vpop.permute.xlu0 %236
    %v239 = vmul.f32 %v214, %v222
    %v240 = vmul.f32 %v213, %v227
    %v241 = vmul.f32 %v212, %v232
    %v242 = vmul.f32 %v211, %v237
    %v243 = vrot.slane %v200, 1
    %v244 = vrot.slane %v201, 1
    %v245 = vrot.slane %v202, 1
    %v246 = vrot.slane %v203, 1
    %vm247 = vcmp.lt.s32.totalorder %v209, 7
    %v248 = vsel %vm247, %v245, %v246
    %v249 = vsel %vm247, %v244, %v245
    %v250 = vsel %vm247, %v243, %v244
    %v251 = vsel %vm247, %v246, %v243
    %v252 = vld [vmem:[#allocation7] sm:$0xff]
    %v253 = vld [vmem:[#allocation7 + $0x8] sm:$0xff]
    %v254 = vld [vmem:[#allocation7 + $0x10] sm:$0xff]
    %v255 = vld [vmem:[#allocation7 + $0x18] sm:$0xff]
    %257 = vset.pattern.permute.xlu0 0
    %258 = vperm.xlu0 %257, %v252
    %v259 = vpop.permute.xlu0 %258
    %262 = vset.pattern.permute.xlu0 0
    %263 = vperm.xlu0 %262, %v253
    %v264 = vpop.permute.xlu0 %263
    %267 = vset.pattern.permute.xlu0 0
    %268 = vperm.xlu0 %267, %v254
    %v269 = vpop.permute.xlu0 %268
    %272 = vset.pattern.permute.xlu0 0
    %273 = vperm.xlu0 %272, %v255
    %v274 = vpop.permute.xlu0 %273
    %v276 = vmul.f32 %v250, %v259
    %v277 = vmul.f32 %v249, %v264
    %v278 = vmul.f32 %v248, %v269
    %v279 = vmul.f32 %v251, %v274
    %280 = vrot.lane.b32.xlu0 %v200, 16
    %v281 = vpop.permute.xlu0 %280
    %282 = vrot.lane.b32.xlu0 %v201, 16
    %v283 = vpop.permute.xlu0 %282
    %284 = vrot.lane.b32.xlu0 %v202, 16
    %v285 = vpop.permute.xlu0 %284
    %286 = vrot.lane.b32.xlu0 %v203, 16
    %v287 = vpop.permute.xlu0 %286
    %v288 = vadd.f32 %v239, %v281
    %v289 = vadd.f32 %v240, %v283
    %v290 = vadd.f32 %v241, %v285
    %v291 = vadd.f32 %v242, %v287
    %292 = vrot.lane.b32.xlu0 %v276, 32
    %v293 = vpop.permute.xlu0 %292
    %294 = vrot.lane.b32.xlu0 %v277, 32
    %v295 = vpop.permute.xlu0 %294
    %296 = vrot.lane.b32.xlu0 %v278, 32
    %v297 = vpop.permute.xlu0 %296
    %298 = vrot.lane.b32.xlu0 %v279, 32
    %v299 = vpop.permute.xlu0 %298
    %v300 = vadd.f32 %v288, %v293
    %v301 = vadd.f32 %v289, %v295
    %v302 = vadd.f32 %v290, %v297
    %v303 = vadd.f32 %v291, %v299
    %v304 = vpack.c.bf16 %v301, %v300
    %v305 = vpack.c.bf16 %v303, %v302
    %v306 = vld [vmem:[#allocation2] sm:$0xf]
    %v307 = vld [vmem:[#allocation2 + $0x4] sm:$0xf]
    %v308 = vld [vmem:[#allocation2 + $0x8] sm:$0xf]
    %v309 = vld [vmem:[#allocation2 + $0xc] sm:$0xf]
    %v310 = vld [vmem:[#allocation2 + $0x10] sm:$0xf]
    %v311 = vld [vmem:[#allocation2 + $0x14] sm:$0xf]
    %v312 = vld [vmem:[#allocation2 + $0x18] sm:$0xf]
    %v313 = vld [vmem:[#allocation2 + $0x1c] sm:$0xf]
    %v314 = vld [vmem:[#allocation2 + $0x20] sm:$0xf]
    %v315 = vld [vmem:[#allocation2 + $0x24] sm:$0xf]
    %v316 = vld [vmem:[#allocation2 + $0x28] sm:$0xf]
    %v317 = vld [vmem:[#allocation2 + $0x2c] sm:$0xf]
    %v318 = vld [vmem:[#allocation2 + $0x30] sm:$0xf]
    %v319 = vld [vmem:[#allocation2 + $0x34] sm:$0xf]
    %v320 = vld [vmem:[#allocation2 + $0x38] sm:$0xf]
    %v321 = vld [vmem:[#allocation2 + $0x3c] sm:$0xf]
    %v322 = vld [vmem:[%s2] sm:$0x1]
    %v324 = vperm.slane %v322, 0
    %v342 = vunpack.c.l.b16 %v306
    %v343 = vunpack.c.l.b16 %v307
    %v344 = vunpack.c.l.b16 %v308
    %v345 = vunpack.c.l.b16 %v309
    %v346 = vunpack.c.l.b16 %v310
    %v347 = vunpack.c.l.b16 %v311
    %v348 = vunpack.c.l.b16 %v312
    %v349 = vunpack.c.l.b16 %v313
    %v350 = vunpack.c.l.b16 %v314
    %v351 = vunpack.c.l.b16 %v315
    %v352 = vunpack.c.l.b16 %v316
    %v353 = vunpack.c.l.b16 %v317
    %v354 = vunpack.c.l.b16 %v318
    %v355 = vunpack.c.l.b16 %v319
    %v356 = vunpack.c.l.b16 %v320
    %v357 = vunpack.c.l.b16 %v321
    %v358 = vpack.c.b16 %v343, %v342
    %v359 = vpack.c.b16 %v345, %v344
    %v360 = vpack.c.b16 %v347, %v346
    %v361 = vpack.c.b16 %v349, %v348
    %v362 = vpack.c.b16 %v351, %v350
    %v363 = vpack.c.b16 %v353, %v352
    %v364 = vpack.c.b16 %v355, %v354
    %v365 = vpack.c.b16 %v357, %v356
    %374 = vmatpush.bf16.msra.mxu0 %v365
    %375 = vmatpush.bf16.msra.mxu0 %v364
    %376 = vmatpush.bf16.msra.mxu0 %v363
    %377 = vmatpush.bf16.msra.mxu0 %v362
    %378 = vmatpush.bf16.msra.mxu0 %v361
    %379 = vmatpush.bf16.msra.mxu0 %v360
    %380 = vmatpush.bf16.msra.mxu0 %v359
    %381 = vmatpush.bf16.msra.mxu0 %v358
    %382 = vmatmul.bf16.gmra.mxu0 %v304
    %v383 = vpop.f32.mrf.mxu0
    %v384 = vadd.f32 %v324, %v383
    %v385 = vpop.f32.mrf.mxu0
    %v386 = vadd.f32 %v324, %v385
    %387 = vmatmul.bf16.gmra.mxu0 %v305
    %v388 = vpop.f32.mrf.mxu0
    %v389 = vadd.f32 %v324, %v388
    %v390 = vpop.f32.mrf.mxu0
    %v391 = vadd.f32 %v324, %v390
    %392 = vdwg.mxu0
    %v393 = vmax.f32 %v384, 0.0
    %v394 = vmax.f32 %v386, 0.0
    %v395 = vmax.f32 %v389, 0.0
    %v396 = vmax.f32 %v391, 0.0
    %v397 = vrot.slane %v393, 1
    %v398 = vrot.slane %v394, 1
    %v399 = vrot.slane %v395, 1
    %v400 = vrot.slane %v396, 1
    %v401 = vsel %vm247, %v399, %v400
    %v402 = vsel %vm247, %v398, %v399
    %v403 = vsel %vm247, %v397, %v398
    %v404 = vsel %vm247, %v400, %v397
    %v405 = vmax.f32 %v393, %v403
    %v406 = vmax.f32 %v394, %v402
    %v407 = vmax.f32 %v395, %v401
    %v408 = vmax.f32 %v396, %v404
    %v409 = vrot.slane %v405, 6
    %v410 = vrot.slane %v406, 6
    %v411 = vrot.slane %v407, 6
    %v412 = vrot.slane %v408, 6
    %vm413 = vcmp.lt.s32.totalorder %v209, 2
    %v414 = vsel %vm413, %v411, %v412
    %v415 = vsel %vm413, %v410, %v411
    %v416 = vsel %vm413, %v409, %v410
    %v417 = vsel %vm413, %v412, %v409
    %v418 = vld [vmem:[#allocation10] sm:$0xff]
    %v419 = vld [vmem:[#allocation10 + $0x8] sm:$0xff]
    %v420 = vld [vmem:[#allocation10 + $0x10] sm:$0xff]
    %v421 = vld [vmem:[#allocation10 + $0x18] sm:$0xff]
    %423 = vset.pattern.permute.xlu0 0
    %424 = vperm.xlu0 %423, %v418
    %v425 = vpop.permute.xlu0 %424
    %428 = vset.pattern.permute.xlu0 0
    %429 = vperm.xlu0 %428, %v419
    %v430 = vpop.permute.xlu0 %429
    %433 = vset.pattern.permute.xlu0 0
    %434 = vperm.xlu0 %433, %v420
    %v435 = vpop.permute.xlu0 %434
    %438 = vset.pattern.permute.xlu0 0
    %439 = vperm.xlu0 %438, %v421
    %v440 = vpop.permute.xlu0 %439
    %v442 = vmul.f32 %v417, %v425
    %v443 = vmul.f32 %v416, %v430
    %v444 = vmul.f32 %v415, %v435
    %v445 = vmul.f32 %v414, %v440
    %v446 = vrot.slane %v405, 2
    %v447 = vrot.slane %v406, 2
    %v448 = vrot.slane %v407, 2
    %v449 = vrot.slane %v408, 2
    %vm450 = vcmp.lt.s32.totalorder %v209, 6
    %v451 = vsel %vm450, %v448, %v449
    %v452 = vsel %vm450, %v447, %v448
    %v453 = vsel %vm450, %v446, %v447
    %v454 = vsel %vm450, %v449, %v446
    %v455 = vld [vmem:[#allocation11] sm:$0xff]
    %v456 = vld [vmem:[#allocation11 + $0x8] sm:$0xff]
    %v457 = vld [vmem:[#allocation11 + $0x10] sm:$0xff]
    %v458 = vld [vmem:[#allocation11 + $0x18] sm:$0xff]
    %460 = vset.pattern.permute.xlu0 0
    %461 = vperm.xlu0 %460, %v455
    %v462 = vpop.permute.xlu0 %461
    %465 = vset.pattern.permute.xlu0 0
    %466 = vperm.xlu0 %465, %v456
    %v467 = vpop.permute.xlu0 %466
    %470 = vset.pattern.permute.xlu0 0
    %471 = vperm.xlu0 %470, %v457
    %v472 = vpop.permute.xlu0 %471
    %475 = vset.pattern.permute.xlu0 0
    %476 = vperm.xlu0 %475, %v458
    %v477 = vpop.permute.xlu0 %476
    %v479 = vmul.f32 %v453, %v462
    %v480 = vmul.f32 %v452, %v467
    %v481 = vmul.f32 %v451, %v472
    %v482 = vmul.f32 %v454, %v477
    %483 = vrot.lane.b32.xlu0 %v405, 16
    %v484 = vpop.permute.xlu0 %483
    %485 = vrot.lane.b32.xlu0 %v406, 16
    %v486 = vpop.permute.xlu0 %485
    %487 = vrot.lane.b32.xlu0 %v407, 16
    %v488 = vpop.permute.xlu0 %487
    %489 = vrot.lane.b32.xlu0 %v408, 16
    %v490 = vpop.permute.xlu0 %489
    %v491 = vadd.f32 %v442, %v484
    %v492 = vadd.f32 %v443, %v486
    %v493 = vadd.f32 %v444, %v488
    %v494 = vadd.f32 %v445, %v490
    %495 = vrot.lane.b32.xlu0 %v479, 32
    %v496 = vpop.permute.xlu0 %495
    %497 = vrot.lane.b32.xlu0 %v480, 32
    %v498 = vpop.permute.xlu0 %497
    %499 = vrot.lane.b32.xlu0 %v481, 32
    %v500 = vpop.permute.xlu0 %499
    %501 = vrot.lane.b32.xlu0 %v482, 32
    %v502 = vpop.permute.xlu0 %501
    %v503 = vadd.f32 %v491, %v496
    %v504 = vadd.f32 %v492, %v498
    %v505 = vadd.f32 %v493, %v500
    %v506 = vadd.f32 %v494, %v502
    %v507 = vpack.c.bf16 %v504, %v503
    %v508 = vpack.c.bf16 %v506, %v505
    %v509 = vld [vmem:[#allocation8] sm:$0xf]
    %v510 = vld [vmem:[#allocation8 + $0x4] sm:$0xf]
    %v511 = vld [vmem:[#allocation8 + $0x8] sm:$0xf]
    %v512 = vld [vmem:[#allocation8 + $0xc] sm:$0xf]
    %v513 = vld [vmem:[#allocation8 + $0x10] sm:$0xf]
    %v514 = vld [vmem:[#allocation8 + $0x14] sm:$0xf]
    %v515 = vld [vmem:[#allocation8 + $0x18] sm:$0xf]
    %v516 = vld [vmem:[#allocation8 + $0x1c] sm:$0xf]
    %v517 = vld [vmem:[#allocation8 + $0x20] sm:$0xf]
    %v518 = vld [vmem:[#allocation8 + $0x24] sm:$0xf]
    %v519 = vld [vmem:[#allocation8 + $0x28] sm:$0xf]
    %v520 = vld [vmem:[#allocation8 + $0x2c] sm:$0xf]
    %v521 = vld [vmem:[#allocation8 + $0x30] sm:$0xf]
    %v522 = vld [vmem:[#allocation8 + $0x34] sm:$0xf]
    %v523 = vld [vmem:[#allocation8 + $0x38] sm:$0xf]
    %v524 = vld [vmem:[#allocation8 + $0x3c] sm:$0xf]
    %v525 = vld [vmem:[%s6] sm:$0x1]
    %v527 = vperm.slane %v525, 0
    %v545 = vunpack.c.l.b16 %v509
    %v546 = vunpack.c.l.b16 %v510
    %v547 = vunpack.c.l.b16 %v511
    %v548 = vunpack.c.l.b16 %v512
    %v549 = vunpack.c.l.b16 %v513
    %v550 = vunpack.c.l.b16 %v514
    %v551 = vunpack.c.l.b16 %v515
    %v552 = vunpack.c.l.b16 %v516
    %v553 = vunpack.c.l.b16 %v517
    %v554 = vunpack.c.l.b16 %v518
    %v555 = vunpack.c.l.b16 %v519
    %v556 = vunpack.c.l.b16 %v520
    %v557 = vunpack.c.l.b16 %v521
    %v558 = vunpack.c.l.b16 %v522
    %v559 = vunpack.c.l.b16 %v523
    %v560 = vunpack.c.l.b16 %v524
    %v561 = vpack.c.b16 %v546, %v545
    %v562 = vpack.c.b16 %v548, %v547
    %v563 = vpack.c.b16 %v550, %v549
    %v564 = vpack.c.b16 %v552, %v551
    %v565 = vpack.c.b16 %v554, %v553
    %v566 = vpack.c.b16 %v556, %v555
    %v567 = vpack.c.b16 %v558, %v557
    %v568 = vpack.c.b16 %v560, %v559
    %577 = vmatpush.bf16.msra.mxu0 %v568
    %578 = vmatpush.bf16.msra.mxu0 %v567
    %579 = vmatpush.bf16.msra.mxu0 %v566
    %580 = vmatpush.bf16.msra.mxu0 %v565
    %581 = vmatpush.bf16.msra.mxu0 %v564
    %582 = vmatpush.bf16.msra.mxu0 %v563
    %583 = vmatpush.bf16.msra.mxu0 %v562
    %584 = vmatpush.bf16.msra.mxu0 %v561
    %585 = vmatmul.bf16.gmra.mxu0 %v507
    %v586 = vpop.f32.mrf.mxu0
    %v587 = vadd.f32 %v527, %v586
    %v588 = vpop.f32.mrf.mxu0
    %v589 = vadd.f32 %v527, %v588
    %590 = vmatmul.bf16.gmra.mxu0 %v508
    %v591 = vpop.f32.mrf.mxu0
    %v592 = vadd.f32 %v527, %v591
    %v593 = vpop.f32.mrf.mxu0
    %v594 = vadd.f32 %v527, %v593
    %595 = vdwg.mxu0
    %v596 = vmax.f32 %v587, 0.0
    %v597 = vmax.f32 %v589, 0.0
    %v598 = vmax.f32 %v592, 0.0
    %v599 = vmax.f32 %v594, 0.0
    %v600 = vrot.slane %v596, 2
    %v601 = vrot.slane %v597, 2
    %v602 = vrot.slane %v598, 2
    %v603 = vrot.slane %v599, 2
    %v604 = vsel %vm450, %v602, %v603
    %v605 = vsel %vm450, %v601, %v602
    %v606 = vsel %vm450, %v600, %v601
    %v607 = vsel %vm450, %v603, %v600
    %v608 = vmax.f32 %v596, %v606
    %v609 = vmax.f32 %v597, %v605
    %v610 = vmax.f32 %v598, %v604
    %v611 = vmax.f32 %v599, %v607
    %v612 = vrot.slane %v608, 4
    %v613 = vrot.slane %v609, 4
    %v614 = vrot.slane %v610, 4
    %v615 = vrot.slane %v611, 4
    %vm616 = vcmp.lt.s32.totalorder %v209, 4
    %v617 = vsel %vm616, %v614, %v615
    %v618 = vsel %vm616, %v613, %v614
    %v619 = vsel %vm616, %v612, %v613
    %v620 = vsel %vm616, %v615, %v612
    %v621 = vld [vmem:[#allocation14] sm:$0xff]
    %v622 = vld [vmem:[#allocation14 + $0x8] sm:$0xff]
    %v623 = vld [vmem:[#allocation14 + $0x10] sm:$0xff]
    %v624 = vld [vmem:[#allocation14 + $0x18] sm:$0xff]
    %626 = vset.pattern.permute.xlu0 0
    %627 = vperm.xlu0 %626, %v621
    %v628 = vpop.permute.xlu0 %627
    %631 = vset.pattern.permute.xlu0 0
    %632 = vperm.xlu0 %631, %v622
    %v633 = vpop.permute.xlu0 %632
    %636 = vset.pattern.permute.xlu0 0
    %637 = vperm.xlu0 %636, %v623
    %v638 = vpop.permute.xlu0 %637
    %641 = vset.pattern.permute.xlu0 0
    %642 = vperm.xlu0 %641, %v624
    %v643 = vpop.permute.xlu0 %642
    %v645 = vmul.f32 %v620, %v628
    %v646 = vmul.f32 %v619, %v633
    %v647 = vmul.f32 %v618, %v638
    %v648 = vmul.f32 %v617, %v643
    %v649 = vld [vmem:[%s12] sm:$0xff]
    %v650 = vld [vmem:[%s12 + $0x8] sm:$0xff]
    %v651 = vld [vmem:[%s12 + $0x10] sm:$0xff]
    %v652 = vld [vmem:[%s12 + $0x18] sm:$0xff]
    %654 = vset.pattern.permute.xlu0 0
    %655 = vperm.xlu0 %654, %v649
    %v656 = vpop.permute.xlu0 %655
    %659 = vset.pattern.permute.xlu0 0
    %660 = vperm.xlu0 %659, %v650
    %v661 = vpop.permute.xlu0 %660
    %664 = vset.pattern.permute.xlu0 0
    %665 = vperm.xlu0 %664, %v651
    %v666 = vpop.permute.xlu0 %665
    %669 = vset.pattern.permute.xlu0 0
    %670 = vperm.xlu0 %669, %v652
    %v671 = vpop.permute.xlu0 %670
    %v673 = vmul.f32 %v619, %v656
    %v674 = vmul.f32 %v618, %v661
    %v675 = vmul.f32 %v617, %v666
    %v676 = vmul.f32 %v620, %v671
    %677 = vrot.lane.b32.xlu0 %v608, 16
    %v678 = vpop.permute.xlu0 %677
    %679 = vrot.lane.b32.xlu0 %v609, 16
    %v680 = vpop.permute.xlu0 %679
    %681 = vrot.lane.b32.xlu0 %v610, 16
    %v682 = vpop.permute.xlu0 %681
    %683 = vrot.lane.b32.xlu0 %v611, 16
    %v684 = vpop.permute.xlu0 %683
    %v685 = vadd.f32 %v645, %v678
    %v686 = vadd.f32 %v646, %v680
    %v687 = vadd.f32 %v647, %v682
    %v688 = vadd.f32 %v648, %v684
    %689 = vrot.lane.b32.xlu0 %v673, 32
    %v690 = vpop.permute.xlu0 %689
    %691 = vrot.lane.b32.xlu0 %v674, 32
    %v692 = vpop.permute.xlu0 %691
    %693 = vrot.lane.b32.xlu0 %v675, 32
    %v694 = vpop.permute.xlu0 %693
    %695 = vrot.lane.b32.xlu0 %v676, 32
    %v696 = vpop.permute.xlu0 %695
    %v697 = vadd.f32 %v685, %v690
    %v698 = vadd.f32 %v686, %v692
    %v699 = vadd.f32 %v687, %v694
    %v700 = vadd.f32 %v688, %v696
    %v701 = vpack.c.bf16 %v698, %v697
    %v702 = vpack.c.bf16 %v700, %v699
    %v703 = vld [vmem:[#allocation13] sm:$0xf]
    %v704 = vld [vmem:[#allocation13 + $0x4] sm:$0xf]
    %v705 = vld [vmem:[#allocation13 + $0x8] sm:$0xf]
    %v706 = vld [vmem:[#allocation13 + $0xc] sm:$0xf]
    %v707 = vld [vmem:[#allocation13 + $0x10] sm:$0xf]
    %v708 = vld [vmem:[#allocation13 + $0x14] sm:$0xf]
    %v709 = vld [vmem:[#allocation13 + $0x18] sm:$0xf]
    %v710 = vld [vmem:[#allocation13 + $0x1c] sm:$0xf]
    %v711 = vld [vmem:[#allocation13 + $0x20] sm:$0xf]
    %v712 = vld [vmem:[#allocation13 + $0x24] sm:$0xf]
    %v713 = vld [vmem:[#allocation13 + $0x28] sm:$0xf]
    %v714 = vld [vmem:[#allocation13 + $0x2c] sm:$0xf]
    %v715 = vld [vmem:[#allocation13 + $0x30] sm:$0xf]
    %v716 = vld [vmem:[#allocation13 + $0x34] sm:$0xf]
    %v717 = vld [vmem:[#allocation13 + $0x38] sm:$0xf]
    %v718 = vld [vmem:[#allocation13 + $0x3c] sm:$0xf]
    %v719 = vld [vmem:[%s10] sm:$0x1]
    %v721 = vperm.slane %v719, 0
    %v739 = vunpack.c.l.b16 %v703
    %v740 = vunpack.c.l.b16 %v704
    %v741 = vunpack.c.l.b16 %v705
    %v742 = vunpack.c.l.b16 %v706
    %v743 = vunpack.c.l.b16 %v707
    %v744 = vunpack.c.l.b16 %v708
    %v745 = vunpack.c.l.b16 %v709
    %v746 = vunpack.c.l.b16 %v710
    %v747 = vunpack.c.l.b16 %v711
    %v748 = vunpack.c.l.b16 %v712
    %v749 = vunpack.c.l.b16 %v713
    %v750 = vunpack.c.l.b16 %v714
    %v751 = vunpack.c.l.b16 %v715
    %v752 = vunpack.c.l.b16 %v716
    %v753 = vunpack.c.l.b16 %v717
    %v754 = vunpack.c.l.b16 %v718
    %v755 = vpack.c.b16 %v740, %v739
    %v756 = vpack.c.b16 %v742, %v741
    %v757 = vpack.c.b16 %v744, %v743
    %v758 = vpack.c.b16 %v746, %v745
    %v759 = vpack.c.b16 %v748, %v747
    %v760 = vpack.c.b16 %v750, %v749
    %v761 = vpack.c.b16 %v752, %v751
    %v762 = vpack.c.b16 %v754, %v753
    %771 = vmatpush.bf16.msra.mxu0 %v762
    %772 = vmatpush.bf16.msra.mxu0 %v761
    %773 = vmatpush.bf16.msra.mxu0 %v760
    %774 = vmatpush.bf16.msra.mxu0 %v759
    %775 = vmatpush.bf16.msra.mxu0 %v758
    %776 = vmatpush.bf16.msra.mxu0 %v757
    %777 = vmatpush.bf16.msra.mxu0 %v756
    %778 = vmatpush.bf16.msra.mxu0 %v755
    %779 = vmatmul.bf16.gmra.mxu0 %v701
    %v780 = vpop.f32.mrf.mxu0
    %v781 = vadd.f32 %v721, %v780
    %v782 = vpop.f32.mrf.mxu0
    %v783 = vadd.f32 %v721, %v782
    %784 = vmatmul.bf16.gmra.mxu0 %v702
    %v785 = vpop.f32.mrf.mxu0
    %v786 = vadd.f32 %v721, %v785
    %v787 = vpop.f32.mrf.mxu0
    %v788 = vadd.f32 %v721, %v787
    %789 = vdwg.mxu0
    %v790 = vmax.f32 %v781, 0.0
    %v791 = vmax.f32 %v783, 0.0
    %v792 = vmax.f32 %v786, 0.0
    %v793 = vmax.f32 %v788, 0.0
    %v794 = vld [vmem:[%s13] sm:$0xff]
    %vm795 = vcmask 261120
    %v797 = vsel %vm795, %v794, 0
    %799 = vmatpush.msra.mxu0 0.0
    %800 = vmatpush.msra.mxu0 0.0
    %801 = vmatpush.msra.mxu0 0.0
    %802 = vmatpush.msra.mxu0 0.0
    %803 = vmatpush.msra.mxu0 0.0
    %804 = vmatpush.msra.mxu0 0.0
    %805 = vmatpush.msra.mxu0 0.0
    %806 = vmatpush.msra.mxu0 0.0
    %807 = vmatpush.msra.mxu0 0.0
    %808 = vmatpush.msra.mxu0 0.0
    %809 = vmatpush.msra.mxu0 0.0
    %810 = vmatpush.msra.mxu0 0.0
    %811 = vmatpush.msra.mxu0 %v793
    %812 = vmatpush.msra.mxu0 %v792
    %813 = vmatpush.msra.mxu0 %v791
    %814 = vmatpush.msra.mxu0 %v790
    %815 = vmatmul.f32.gmra.mxu0 %v797
    %v816 = vpop.f32.mrf.mxu0
    %v817 = vadd.f32 0.0, %v816
    %818 = vdwg.mxu0
    %v819 = vsub.f32 0.0, %v817
    %v820 = vmul.f32 %v819, 1.442695
    %v821 = vpow.pop %v820
    %v822 = vadd.f32 %v821, 1.0
    %v823 = vrcp.pop %v822
    %v824 = vmul.f32 %v817, %v823
    %v825 = vpack.c.bf16 %v824, %v824
    %v826 = vld [vmem:[#allocation16] sm:$0xf]
    %v827 = vld [vmem:[#allocation16 + $0x4] sm:$0xf]
    %v828 = vld [vmem:[#allocation16 + $0x8] sm:$0xf]
    %v829 = vld [vmem:[#allocation16 + $0xc] sm:$0xf]
    %v830 = vld [vmem:[#allocation16 + $0x10] sm:$0xf]
    %v831 = vld [vmem:[#allocation16 + $0x14] sm:$0xf]
    %v832 = vld [vmem:[#allocation16 + $0x18] sm:$0xf]
    %v833 = vld [vmem:[#allocation16 + $0x1c] sm:$0xf]
    %v834 = vld [vmem:[#allocation16 + $0x20] sm:$0xf]
    %v835 = vld [vmem:[#allocation16 + $0x24] sm:$0xf]
    %v836 = vld [vmem:[#allocation16 + $0x28] sm:$0xf]
    %v837 = vld [vmem:[#allocation16 + $0x2c] sm:$0xf]
    %v838 = vld [vmem:[#allocation16 + $0x30] sm:$0xf]
    %v839 = vld [vmem:[#allocation16 + $0x34] sm:$0xf]
    %v840 = vld [vmem:[#allocation16 + $0x38] sm:$0xf]
    %v841 = vld [vmem:[#allocation16 + $0x3c] sm:$0xf]
    %v842 = vld [vmem:[#allocation16 + $0x40] sm:$0xf]
    %v843 = vld [vmem:[#allocation16 + $0x44] sm:$0xf]
    %v844 = vld [vmem:[#allocation16 + $0x48] sm:$0xf]
    %v845 = vld [vmem:[#allocation16 + $0x4c] sm:$0xf]
    %v846 = vld [vmem:[#allocation16 + $0x50] sm:$0xf]
    %v847 = vld [vmem:[#allocation16 + $0x54] sm:$0xf]
    %v848 = vld [vmem:[#allocation16 + $0x58] sm:$0xf]
    %v849 = vld [vmem:[#allocation16 + $0x5c] sm:$0xf]
    %v850 = vld [vmem:[#allocation16 + $0x60] sm:$0xf]
    %v851 = vld [vmem:[#allocation16 + $0x64] sm:$0xf]
    %v852 = vld [vmem:[#allocation16 + $0x68] sm:$0xf]
    %v853 = vld [vmem:[#allocation16 + $0x6c] sm:$0xf]
    %v854 = vld [vmem:[#allocation16 + $0x70] sm:$0xf]
    %v855 = vld [vmem:[#allocation16 + $0x74] sm:$0xf]
    %v856 = vld [vmem:[#allocation16 + $0x78] sm:$0xf]
    %v857 = vld [vmem:[#allocation16 + $0x7c] sm:$0xf]
    %v859 = vrot.slane %v825, 1
    %v877 = vunpack.c.l.b16 %v842
    %v878 = vunpack.c.l.b16 %v843
    %v879 = vunpack.c.l.b16 %v844
    %v880 = vunpack.c.l.b16 %v845
    %v881 = vunpack.c.l.b16 %v846
    %v882 = vunpack.c.l.b16 %v847
    %v883 = vunpack.c.l.b16 %v848
    %v884 = vunpack.c.l.b16 %v849
    %v885 = vunpack.c.l.b16 %v850
    %v886 = vunpack.c.l.b16 %v851
    %v887 = vunpack.c.l.b16 %v852
    %v888 = vunpack.c.l.b16 %v853
    %v889 = vunpack.c.l.b16 %v854
    %v890 = vunpack.c.l.b16 %v855
    %v891 = vunpack.c.l.b16 %v856
    %v892 = vunpack.c.l.b16 %v857
    %v893 = vpack.c.b16 %v878, %v877
    %v894 = vpack.c.b16 %v880, %v879
    %v895 = vpack.c.b16 %v882, %v881
    %v896 = vpack.c.b16 %v884, %v883
    %v897 = vpack.c.b16 %v886, %v885
    %v898 = vpack.c.b16 %v888, %v887
    %v899 = vpack.c.b16 %v890, %v889
    %v900 = vpack.c.b16 %v892, %v891
    %909 = vmatpush.bf16.msra.mxu0 %v900
    %910 = vmatpush.bf16.msra.mxu0 %v899
    %911 = vmatpush.bf16.msra.mxu0 %v898
    %912 = vmatpush.bf16.msra.mxu0 %v897
    %913 = vmatpush.bf16.msra.mxu0 %v896
    %914 = vmatpush.bf16.msra.mxu0 %v895
    %915 = vmatpush.bf16.msra.mxu0 %v894
    %916 = vmatpush.bf16.msra.mxu0 %v893
    %917 = vmatmul.bf16.gmra.mxu0 %v859
    %v918 = vpop.f32.mrf.mxu0
    %v919 = vadd.f32 0.0, %v918
    %v920 = vpop.f32.mrf.mxu0
    %921 = vdwg.mxu0
    %v938 = vunpack.c.l.b16 %v826
    %v939 = vunpack.c.l.b16 %v827
    %v940 = vunpack.c.l.b16 %v828
    %v941 = vunpack.c.l.b16 %v829
    %v942 = vunpack.c.l.b16 %v830
    %v943 = vunpack.c.l.b16 %v831
    %v944 = vunpack.c.l.b16 %v832
    %v945 = vunpack.c.l.b16 %v833
    %v946 = vunpack.c.l.b16 %v834
    %v947 = vunpack.c.l.b16 %v835
    %v948 = vunpack.c.l.b16 %v836
    %v949 = vunpack.c.l.b16 %v837
    %v950 = vunpack.c.l.b16 %v838
    %v951 = vunpack.c.l.b16 %v839
    %v952 = vunpack.c.l.b16 %v840
    %v953 = vunpack.c.l.b16 %v841
    %v954 = vpack.c.b16 %v939, %v938
    %v955 = vpack.c.b16 %v941, %v940
    %v956 = vpack.c.b16 %v943, %v942
    %v957 = vpack.c.b16 %v945, %v944
    %v958 = vpack.c.b16 %v947, %v946
    %v959 = vpack.c.b16 %v949, %v948
    %v960 = vpack.c.b16 %v951, %v950
    %v961 = vpack.c.b16 %v953, %v952
    %970 = vmatpush.bf16.msra.mxu0 %v961
    %971 = vmatpush.bf16.msra.mxu0 %v960
    %972 = vmatpush.bf16.msra.mxu0 %v959
    %973 = vmatpush.bf16.msra.mxu0 %v958
    %974 = vmatpush.bf16.msra.mxu0 %v957
    %975 = vmatpush.bf16.msra.mxu0 %v956
    %976 = vmatpush.bf16.msra.mxu0 %v955
    %977 = vmatpush.bf16.msra.mxu0 %v954
    %978 = vmatmul.bf16.gmra.mxu0 %v825
    %v979 = vpop.f32.mrf.mxu0
    %v980 = vadd.f32 %v919, %v979
    %v981 = vpop.f32.mrf.mxu0
    %982 = vdwg.mxu0
    %v983 = vld [vmem:[#allocation16 + $0x80] sm:$0xf]
    %v984 = vld [vmem:[#allocation16 + $0x84] sm:$0xf]
    %v985 = vld [vmem:[#allocation16 + $0x88] sm:$0xf]
    %v986 = vld [vmem:[#allocation16 + $0x8c] sm:$0xf]
    %v987 = vld [vmem:[#allocation16 + $0x90] sm:$0xf]
    %v988 = vld [vmem:[#allocation16 + $0x94] sm:$0xf]
    %v989 = vld [vmem:[#allocation16 + $0x98] sm:$0xf]
    %v990 = vld [vmem:[#allocation16 + $0x9c] sm:$0xf]
    %v991 = vld [vmem:[#allocation16 + $0xa0] sm:$0xf]
    %v992 = vld [vmem:[#allocation16 + $0xa4] sm:$0xf]
    %v993 = vld [vmem:[#allocation16 + $0xa8] sm:$0xf]
    %v994 = vld [vmem:[#allocation16 + $0xac] sm:$0xf]
    %v995 = vld [vmem:[#allocation16 + $0xb0] sm:$0xf]
    %v996 = vld [vmem:[#allocation16 + $0xb4] sm:$0xf]
    %v997 = vld [vmem:[#allocation16 + $0xb8] sm:$0xf]
    %v998 = vld [vmem:[#allocation16 + $0xbc] sm:$0xf]
    %v999 = vrot.slane %v825, 2
    %v1017 = vunpack.c.l.b16 %v983
    %v1018 = vunpack.c.l.b16 %v984
    %v1019 = vunpack.c.l.b16 %v985
    %v1020 = vunpack.c.l.b16 %v986
    %v1021 = vunpack.c.l.b16 %v987
    %v1022 = vunpack.c.l.b16 %v988
    %v1023 = vunpack.c.l.b16 %v989
    %v1024 = vunpack.c.l.b16 %v990
    %v1025 = vunpack.c.l.b16 %v991
    %v1026 = vunpack.c.l.b16 %v992
    %v1027 = vunpack.c.l.b16 %v993
    %v1028 = vunpack.c.l.b16 %v994
    %v1029 = vunpack.c.l.b16 %v995
    %v1030 = vunpack.c.l.b16 %v996
    %v1031 = vunpack.c.l.b16 %v997
    %v1032 = vunpack.c.l.b16 %v998
    %v1033 = vpack.c.b16 %v1018, %v1017
    %v1034 = vpack.c.b16 %v1020, %v1019
    %v1035 = vpack.c.b16 %v1022, %v1021
    %v1036 = vpack.c.b16 %v1024, %v1023
    %v1037 = vpack.c.b16 %v1026, %v1025
    %v1038 = vpack.c.b16 %v1028, %v1027
    %v1039 = vpack.c.b16 %v1030, %v1029
    %v1040 = vpack.c.b16 %v1032, %v1031
    %1049 = vmatpush.bf16.msra.mxu0 %v1040
    %1050 = vmatpush.bf16.msra.mxu0 %v1039
    %1051 = vmatpush.bf16.msra.mxu0 %v1038
    %1052 = vmatpush.bf16.msra.mxu0 %v1037
    %1053 = vmatpush.bf16.msra.mxu0 %v1036
    %1054 = vmatpush.bf16.msra.mxu0 %v1035
    %1055 = vmatpush.bf16.msra.mxu0 %v1034
    %1056 = vmatpush.bf16.msra.mxu0 %v1033
    %1057 = vmatmul.bf16.gmra.mxu0 %v999
    %v1058 = vpop.f32.mrf.mxu0
    %v1059 = vadd.f32 0.0, %v1058
    %v1060 = vpop.f32.mrf.mxu0
    %1061 = vdwg.mxu0
    %v1062 = vadd.f32 %v980, %v1059
    %v1063 = vld [vmem:[#allocation16 + $0xc0] sm:$0xf]
    %v1064 = vld [vmem:[#allocation16 + $0xc4] sm:$0xf]
    %v1065 = vld [vmem:[#allocation16 + $0xc8] sm:$0xf]
    %v1066 = vld [vmem:[#allocation16 + $0xcc] sm:$0xf]
    %v1067 = vld [vmem:[#allocation16 + $0xd0] sm:$0xf]
    %v1068 = vld [vmem:[#allocation16 + $0xd4] sm:$0xf]
    %v1069 = vld [vmem:[#allocation16 + $0xd8] sm:$0xf]
    %v1070 = vld [vmem:[#allocation16 + $0xdc] sm:$0xf]
    %v1071 = vld [vmem:[#allocation16 + $0xe0] sm:$0xf]
    %v1072 = vld [vmem:[#allocation16 + $0xe4] sm:$0xf]
    %v1073 = vld [vmem:[#allocation16 + $0xe8] sm:$0xf]
    %v1074 = vld [vmem:[#allocation16 + $0xec] sm:$0xf]
    %v1075 = vld [vmem:[#allocation16 + $0xf0] sm:$0xf]
    %v1076 = vld [vmem:[#allocation16 + $0xf4] sm:$0xf]
    %v1077 = vld [vmem:[#allocation16 + $0xf8] sm:$0xf]
    %v1078 = vld [vmem:[#allocation16 + $0xfc] sm:$0xf]
    %v1079 = vrot.slane %v825, 3
    %v1097 = vunpack.c.l.b16 %v1063
    %v1098 = vunpack.c.l.b16 %v1064
    %v1099 = vunpack.c.l.b16 %v1065
    %v1100 = vunpack.c.l.b16 %v1066
    %v1101 = vunpack.c.l.b16 %v1067
    %v1102 = vunpack.c.l.b16 %v1068
    %v1103 = vunpack.c.l.b16 %v1069
    %v1104 = vunpack.c.l.b16 %v1070
    %v1105 = vunpack.c.l.b16 %v1071
    %v1106 = vunpack.c.l.b16 %v1072
    %v1107 = vunpack.c.l.b16 %v1073
    %v1108 = vunpack.c.l.b16 %v1074
    %v1109 = vunpack.c.l.b16 %v1075
    %v1110 = vunpack.c.l.b16 %v1076
    %v1111 = vunpack.c.l.b16 %v1077
    %v1112 = vunpack.c.l.b16 %v1078
    %v1113 = vpack.c.b16 %v1098, %v1097
    %v1114 = vpack.c.b16 %v1100, %v1099
    %v1115 = vpack.c.b16 %v1102, %v1101
    %v1116 = vpack.c.b16 %v1104, %v1103
    %v1117 = vpack.c.b16 %v1106, %v1105
    %v1118 = vpack.c.b16 %v1108, %v1107
    %v1119 = vpack.c.b16 %v1110, %v1109
    %v1120 = vpack.c.b16 %v1112, %v1111
    %1129 = vmatpush.bf16.msra.mxu0 %v1120
    %1130 = vmatpush.bf16.msra.mxu0 %v1119
    %1131 = vmatpush.bf16.msra.mxu0 %v1118
    %1132 = vmatpush.bf16.msra.mxu0 %v1117
    %1133 = vmatpush.bf16.msra.mxu0 %v1116
    %1134 = vmatpush.bf16.msra.mxu0 %v1115
    %1135 = vmatpush.bf16.msra.mxu0 %v1114
    %1136 = vmatpush.bf16.msra.mxu0 %v1113
    %1137 = vmatmul.bf16.gmra.mxu0 %v1079
    %v1138 = vpop.f32.mrf.mxu0
    %v1139 = vadd.f32 0.0, %v1138
    %v1140 = vpop.f32.mrf.mxu0
    %1141 = vdwg.mxu0
    %v1142 = vadd.f32 %v1062, %v1139
    %v1143 = vld [vmem:[%s15] sm:$0x1]
    %v1145 = vperm.slane %v1143, 0
    %v1147 = vadd.f32 %v1142, %v1145
    %v1148 = vsub.f32 0.0, %v1147
    %v1149 = vmul.f32 %v1148, 1.442695
    %v1150 = vpow.pop %v1149
    %v1151 = vadd.f32 %v1150, 1.0
    %v1152 = vrcp.pop %v1151
    %v1153 = vmul.f32 %v1147, %v1152
    %v1154 = vpack.c.bf16 %v1153, %v1153
    %v1155 = vld [vmem:[%s16] sm:$0xf]
    %v1156 = vld [vmem:[%s16 + $0x4] sm:$0xf]
    %v1157 = vld [vmem:[%s16 + $0x8] sm:$0xf]
    %v1158 = vld [vmem:[%s16 + $0xc] sm:$0xf]
    %v1159 = vld [vmem:[%s16 + $0x10] sm:$0xf]
    %v1160 = vld [vmem:[%s16 + $0x14] sm:$0xf]
    %v1161 = vld [vmem:[%s16 + $0x18] sm:$0xf]
    %v1162 = vld [vmem:[%s16 + $0x1c] sm:$0xf]
    %v1163 = vld [vmem:[%s16 + $0x20] sm:$0xf]
    %v1164 = vld [vmem:[%s16 + $0x24] sm:$0xf]
    %v1165 = vld [vmem:[%s16 + $0x28] sm:$0xf]
    %v1166 = vld [vmem:[%s16 + $0x2c] sm:$0xf]
    %v1167 = vld [vmem:[%s16 + $0x30] sm:$0xf]
    %v1168 = vld [vmem:[%s16 + $0x34] sm:$0xf]
    %v1169 = vld [vmem:[%s16 + $0x38] sm:$0xf]
    %v1170 = vld [vmem:[%s16 + $0x3c] sm:$0xf]
    %v1171 = vld [vmem:[%s17] sm:$0x1]
    %v1173 = vperm.slane %v1171, 0
    %v1191 = vunpack.c.l.b16 %v1155
    %v1192 = vunpack.c.l.b16 %v1156
    %v1193 = vunpack.c.l.b16 %v1157
    %v1194 = vunpack.c.l.b16 %v1158
    %v1195 = vunpack.c.l.b16 %v1159
    %v1196 = vunpack.c.l.b16 %v1160
    %v1197 = vunpack.c.l.b16 %v1161
    %v1198 = vunpack.c.l.b16 %v1162
    %v1199 = vunpack.c.l.b16 %v1163
    %v1200 = vunpack.c.l.b16 %v1164
    %v1201 = vunpack.c.l.b16 %v1165
    %v1202 = vunpack.c.l.b16 %v1166
    %v1203 = vunpack.c.l.b16 %v1167
    %v1204 = vunpack.c.l.b16 %v1168
    %v1205 = vunpack.c.l.b16 %v1169
    %v1206 = vunpack.c.l.b16 %v1170
    %v1207 = vpack.c.b16 %v1192, %v1191
    %v1208 = vpack.c.b16 %v1194, %v1193
    %v1209 = vpack.c.b16 %v1196, %v1195
    %v1210 = vpack.c.b16 %v1198, %v1197
    %v1211 = vpack.c.b16 %v1200, %v1199
    %v1212 = vpack.c.b16 %v1202, %v1201
    %v1213 = vpack.c.b16 %v1204, %v1203
    %v1214 = vpack.c.b16 %v1206, %v1205
    %1223 = vmatpush.bf16.msra.mxu0 %v1214
    %1224 = vmatpush.bf16.msra.mxu0 %v1213
    %1225 = vmatpush.bf16.msra.mxu0 %v1212
    %1226 = vmatpush.bf16.msra.mxu0 %v1211
    %1227 = vmatpush.bf16.msra.mxu0 %v1210
    %1228 = vmatpush.bf16.msra.mxu0 %v1209
    %1229 = vmatpush.bf16.msra.mxu0 %v1208
    %1230 = vmatpush.bf16.msra.mxu0 %v1207
    %1231 = vmatmul.bf16.gmra.mxu0 %v1154
    %v1232 = vpop.f32.mrf.mxu0
    %v1233 = vadd.f32 %v1173, %v1232
    %v1234 = vpop.f32.mrf.mxu0
    %1235 = vdwg.mxu0
    %v1236 = vsub.f32 0.0, %v1233
    %v1237 = vmul.f32 %v1236, 1.442695
    %v1238 = vpow.pop %v1237
    %v1239 = vadd.f32 %v1238, 1.0
    %v1240 = vrcp.pop %v1239
    %v1241 = vmul.f32 %v1233, %v1240
    %1242 = vst [vmem:[#allocation17] sm:$0x3] %v1241
    // Predicated region
    $region110: #{fwd.1} parent=1 // pred_check
      _
    $region111: #{fwd.1} parent=1 // pred_check_branch
      %1244 = sbr.rel (0) target = $region113
    $region112: #{fwd.1} parent=1 // pred_region
      %1246 = vsyncadd [#allocation4], 0
      %s1248 = sshll.u32 [#allocation17], 4
      %s1249 = int_to_ptr.vmem [resolvable:$true] %s1248
      %s1250 = sshll.u32 %s18, 4
      %s1251 = int_to_ptr.hbm [resolvable:$true] %s1250
      %1253 = dma.vmem_to_hbm [thread:$0]  %s1249, 32, %s1251, [#allocation4]
    $region113: #{fwd.1} parent=1 // pred_fallthru
      _
    // Predicated region
    $region114: #{fwd.1} parent=1 // pred_check
      _
    $region115: #{fwd.1} parent=1 // pred_check_branch
      %1255 = sbr.rel (0) target = $region117
    $region116: #{fwd.1} parent=1 // pred_region
      %1257 = dma.done [#allocation4], 32
    $region117: #{fwd.1} parent=1 // pred_fallthru
      _
    %1258 = vsyncpa [#allocation3], 1
    %1259 = vsyncpa [#allocation6], 1
    %1260 = vsyncpa [#allocation9], 1
    %1261 = vsyncpa [#allocation12], 1
    %1262 = vsyncpa [#allocation15], 1
    %1263 = vsyncpa [#allocation4], 1

</llo_original>
